<compile_context>
chip_gen: v7x
topology: tpu7x:2x2x1
jax: 0.10.0
libtpu: 0.0.40
codegen_flags: <defaults>
</compile_context>

<pallas_src>
import math

import jax
import jax.numpy as jnp
from jax.experimental import pallas as pl
from jax.experimental.pallas import tpu as pltpu


# ----------------------------------------------------------------------------
# Pallas kernel: SharedMLP (1x1 convs, BN folded into weights/biases, ReLU)
# ----------------------------------------------------------------------------
def _make_mlp_kernel(num_inputs, bcast_flags, num_layers):
    def kernel(*refs):
        xs = refs[:num_inputs]
        params = refs[num_inputs:-1]
        o_ref = refs[-1]
        tile_n = o_ref.shape[-1]

        # Layer 0: sum of split matmuls (replaces the channel concat in HBM).
        acc = None
        for i in range(num_inputs):
            xi = xs[i][...].astype(jnp.bfloat16)              # (C_i, tile_n) or (C_i, 1)
            p = jnp.dot(params[i][...], xi,
                        preferred_element_type=jnp.float32)   # MXU, f32 acc
            if bcast_flags[i]:                                 # N==1 input: broadcast cols
                p = jnp.broadcast_to(p, (p.shape[0], tile_n))
            acc = p if acc is None else acc + p
        h = jnp.maximum(acc + params[num_inputs][...], 0.0)    # folded-BN bias + ReLU

        idx = num_inputs + 1
        for _ in range(num_layers - 1):
            w = params[idx][...]                               # bf16 (C_out, C_prev)
            b = params[idx + 1][...]                           # f32  (C_out, 1)
            idx += 2
            h = jnp.dot(w, h.astype(jnp.bfloat16),
                        preferred_element_type=jnp.float32)
            h = jnp.maximum(h + b, 0.0)

        o_ref[...] = h.astype(o_ref.dtype)                     # lane-dense store
    return kernel


def shared_mlp_pallas(xs, w0_splits, b0, ws, bs, *,
                      out_dtype=jnp.bfloat16, max_tile_n=1024):
    """SharedMLP over channels-first inputs.

    xs:        list of (B, C_i, N) or (B, C_i, 1) tensors (the latter broadcast
               along N inside the kernel).
    w0_splits: layer-0 weight column blocks matching xs (BN scale pre-folded).
    b0:        layer-0 bias (C0, 1).
    ws, bs:    weights/biases for layers 1..L-1.
    Returns (B, C_last, N) in `out_dtype` (bf16 by default; use jnp.float32 for
    full-precision parity with the PyTorch module).
    """
    B = int(xs[0].shape[0])
    n = max(int(x.shape[2]) for x in xs)
    bcast = tuple(int(x.shape[2]) == 1 and n > 1 for x in xs)
    num_inputs = len(xs)
    num_layers = 1 + len(ws)
    c_last = int((ws[-1] if ws else w0_splits[0]).shape[0])

    # Fixed large tile + cdiv grid (Pallas masks the ragged last block): no gcd
    # fallback to 128-wide tiles, no jnp.pad, no output slice.
    n128 = ((n + 127) // 128) * 128
    tile_n = min(int(max_tile_n), n128)
    # v7x has 2 TensorCores: ensure >= 2 parallel grid steps when B == 1.
    if B == 1:
        while tile_n > 128 and B * pl.cdiv(n, tile_n) < 2:
            tile_n = ((tile_n // 2 + 127) // 128) * 128
    n_tiles = pl.cdiv(n, tile_n)

    in_specs, args = [], []
    for x, bc in zip(xs, bcast):
        c_i = int(x.shape[1])
        if bc:
            in_specs.append(pl.BlockSpec((None, c_i, 1), lambda b, t: (b, 0, 0)))
        else:
            in_specs.append(pl.BlockSpec((None, c_i, tile_n), lambda b, t: (b, 0, t)))
        args.append(x)                        # f32 straight from HBM; cast in-kernel

    def add_param(p, dtype):
        p = p.astype(dtype)
        in_specs.append(pl.BlockSpec(tuple(p.shape), lambda b, t: (0, 0)))
        args.append(p)

    for w0 in w0_splits:
        add_param(w0, jnp.bfloat16)
    add_param(b0, jnp.float32)
    for w, bia in zip(ws, bs):
        add_param(w, jnp.bfloat16)
        add_param(bia, jnp.float32)

    # VMEM budget derived from actual buffer sizes (double-buffered I/O + params
    # + widest intermediate), clamped to <= 48 MiB for v7x's 64 MiB VMEM part.
    in_bytes = sum(int(x.shape[1]) * (1 if bc else tile_n) * 4
                   for x, bc in zip(xs, bcast))
    out_bytes = c_last * tile_n * jnp.dtype(out_dtype).itemsize
    param_bytes = sum(int(a.size) * a.dtype.itemsize for a in args[num_inputs:])
    max_c = max([int(w.shape[0]) for w in w0_splits]
                + [int(w.shape[0]) for w in ws] + [1])
    inter_bytes = max_c * tile_n * (4 + 2)     # f32 activations + bf16 copy
    needed = 2 * (in_bytes + out_bytes + param_bytes) + inter_bytes
    vmem_limit = int(min(max(2 * needed, 32 * 1024 * 1024), 48 * 1024 * 1024))

    return pl.pallas_call(
        _make_mlp_kernel(num_inputs, bcast, num_layers),
        out_shape=jax.ShapeDtypeStruct((B, c_last, n), out_dtype),
        grid_spec=pltpu.PrefetchScalarGridSpec(
            num_scalar_prefetch=0,
            grid=(B, n_tiles),
            in_specs=in_specs,
            out_specs=pl.BlockSpec((None, c_last, tile_n), lambda b, t: (b, 0, t)),
        ),
        compiler_params=pltpu.CompilerParams(
            dimension_semantics=("parallel", "parallel"),
            vmem_limit_bytes=vmem_limit,
        ),
    )(*args)


# ----------------------------------------------------------------------------
# Plain-JAX glue: 3-NN inverse-distance feature interpolation
# ----------------------------------------------------------------------------
def feature_interpolator(dense_xyz, sparse_xyz, sparse_feature, num_neighbors, eps):
    """dense_xyz (B,3,N1), sparse_xyz (B,3,N2), sparse_feature (B,C2,N2)
    -> interpolated feature (B, C2, N1)."""
    # TODO(synk): the k-NN selection and the feature gather are data-dependent
    # index glue and stay in plain JAX; only the SharedMLP runs in the Pallas
    # kernel.  (eps follows the module spec: 1 / clamp(dist, min=eps), squared
    # distances as in the pointnet2 three_nn convention.)
    d = jnp.transpose(dense_xyz, (0, 2, 1))        # (B, N1, 3)
    s = jnp.transpose(sparse_xyz, (0, 2, 1))       # (B, N2, 3)
    # Pairwise squared distances via a matmul (MXU) instead of a (B,N1,N2,3)
    # broadcast subtract.
    d2 = jnp.sum(d * d, axis=-1, keepdims=True)                       # (B, N1, 1)
    s2 = jnp.sum(s * s, axis=-1)[:, None, :]                          # (B, 1, N2)
    cross = jnp.einsum('bnd,bmd->bnm', d, s,
                       preferred_element_type=jnp.float32)            # (B, N1, N2)
    dist2 = jnp.maximum(d2 + s2 - 2.0 * cross, 0.0)

    # k=3 nearest neighbours via iterative masked argmin (cheaper than top_k).
    N2 = dist2.shape[-1]
    lane = jnp.arange(N2, dtype=jnp.int32)
    work = dist2
    idxs, dists = [], []
    for _ in range(num_neighbors):
        idx = jnp.argmin(work, axis=-1).astype(jnp.int32)             # (B, N1)
        dmin = jnp.min(work, axis=-1)                                  # (B, N1)
        idxs.append(idx)
        dists.append(dmin)
        work = jnp.where(lane[None, None, :] == idx[..., None], jnp.inf, work)
    index = jnp.stack(idxs, axis=-1)                                   # (B, N1, K)
    distance = jnp.stack(dists, axis=-1)                               # (B, N1, K)

    inv_distance = 1.0 / jnp.maximum(distance, eps)
    weight = inv_distance / jnp.sum(inv_distance, axis=-1, keepdims=True)

    B, C2, _ = sparse_feature.shape
    N1, K = index.shape[1], index.shape[2]
    idxf = jnp.broadcast_to(index.reshape(B, 1, N1 * K), (B, C2, N1 * K))
    gathered = jnp.take_along_axis(sparse_feature, idxf, axis=2).reshape(B, C2, N1, K)
    return jnp.sum(gathered * weight[:, None, :, :], axis=-1)          # (B, C2, N1)


# ----------------------------------------------------------------------------
# PointnetFPModule
# ----------------------------------------------------------------------------
class PointnetFPModuleJax:
    def __init__(self, in_channels, mlp_channels, num_neighbors, key,
                 out_dtype=jnp.bfloat16):
        assert num_neighbors in (0, 3), "Expected 0 or 3 neighbours"
        self.in_channels = int(in_channels)
        self.mlp_channels = tuple(int(c) for c in mlp_channels)
        self.num_neighbors = int(num_neighbors)
        self.eps = 1e-10
        self.out_dtype = out_dtype

        # Conv1d (kernel size 1, no bias) weight is (C_out, C_in); eval-mode
        # BatchNorm1d is folded at init time: W' = scale * W, b' = beta - mean*scale.
        # TODO(synk): training-mode BatchNorm batch statistics are not reproduced;
        # only eval-mode (running-stat) BN is folded.
        keys = jax.random.split(key, len(self.mlp_channels))
        bn_eps = 1e-5
        self.weights, self.biases = [], []
        c_prev = self.in_channels
        for c_out, k in zip(self.mlp_channels, keys):
            w = jax.random.normal(k, (c_out, c_prev), jnp.float32) / math.sqrt(c_prev)
            gamma = 1.0 + 0.01 * jnp.arange(c_out, dtype=jnp.float32)
            beta = 0.01 * jnp.arange(c_out, dtype=jnp.float32)
            run_mean = jnp.zeros((c_out,), jnp.float32)
            run_var = jnp.ones((c_out,), jnp.float32)
            scale = gamma / jnp.sqrt(run_var + bn_eps)
            self.weights.append(scale[:, None] * w)                 # BN scale folded in
            self.biases.append((beta - run_mean * scale).reshape(c_out, 1))
            c_prev = c_out

    def __call__(self, dense_xyz, sparse_xyz, dense_feature, sparse_feature):
        """dense_xyz (B,3,N1), sparse_xyz (B,3,N2), dense_feature (B,C1,N1) or None,
        sparse_feature (B,C2,N2) -> (B, mlp_channels[-1], N1)."""
        if self.num_neighbors == 0:
            assert sparse_xyz.shape[2] == 1 and sparse_feature.shape[2] == 1
            xs = [sparse_feature]          # (B, C2, 1): broadcast along N in-kernel
            if dense_feature is not None:
                xs.append(dense_feature)
        else:
            interpolated = feature_interpolator(
                dense_xyz, sparse_xyz, sparse_feature, self.num_neighbors, self.eps)
            xs = [interpolated]
            if dense_feature is not None:
                xs.append(dense_feature)

        assert sum(int(x.shape[1]) for x in xs) == self.in_channels
        # Split the layer-0 weight columns to match the (un-concatenated) inputs,
        # avoiding the (B, C_in, N1) concat materialization in HBM.
        w0_splits, off = [], 0
        for x in xs:
            c = int(x.shape[1])
            w0_splits.append(self.weights[0][:, off:off + c])
            off += c
        return shared_mlp_pallas(xs, w0_splits, self.biases[0],
                                 self.weights[1:], self.biases[1:],
                                 out_dtype=self.out_dtype)


if __name__ == "__main__":
    B, C_DENSE, C_SPARSE = 2, 4, 8
    N_DENSE, N_SPARSE = 16, 8
    NUM_NEIGHBORS = 3
    MLP_CHANNELS = (64, 32)

    key = jax.random.PRNGKey(0)
    k1, k2, k3, k4, kp = jax.random.split(key, 5)
    dense_xyz = jax.random.uniform(k1, (B, 3, N_DENSE), dtype=jnp.float32)
    sparse_xyz = jax.random.uniform(k2, (B, 3, N_SPARSE), dtype=jnp.float32)
    dense_feature = jax.random.normal(k3, (B, C_DENSE, N_DENSE), dtype=jnp.float32)
    sparse_feature = jax.random.normal(k4, (B, C_SPARSE, N_SPARSE), dtype=jnp.float32)

    module = PointnetFPModuleJax(
        in_channels=C_DENSE + C_SPARSE,
        mlp_channels=MLP_CHANNELS,
        num_neighbors=NUM_NEIGHBORS,
        key=kp)

    out = module(dense_xyz, sparse_xyz, dense_feature, sparse_feature)
    jax.block_until_ready(out)
    assert out.shape == (B, MLP_CHANNELS[-1], N_DENSE)
    assert bool(jnp.all(jnp.isfinite(out.astype(jnp.float32))))
    print("KERNEL_OK")
</pallas_src>

<mosaic_0001>
module attributes {stable_mosaic.version = 11 : i64} {
  func.func @kernel(%arg0: i32, %arg1: i32, %arg2: memref<1x8x128xf32, #tpu.memory_space<vmem>>, %arg3: memref<1x4x128xf32, #tpu.memory_space<vmem>>, %arg4: memref<64x8xbf16, #tpu.memory_space<vmem>>, %arg5: memref<64x4xbf16, #tpu.memory_space<vmem>>, %arg6: memref<64x1xf32, #tpu.memory_space<vmem>>, %arg7: memref<32x64xbf16, #tpu.memory_space<vmem>>, %arg8: memref<32x1xf32, #tpu.memory_space<vmem>>, %arg9: memref<1x32x128xbf16, #tpu.memory_space<vmem>>) attributes {dimension_semantics = [#tpu.dimension_semantics<parallel>, #tpu.dimension_semantics<parallel>], iteration_bounds = array<i64: 2, 1>, scalar_prefetch = 0 : i64, scratch_operands = 0 : i64, tpu.core_type = #tpu.core_type<tc>, window_params = [{transform_indices = @transform_0, window_bounds = array<i64: 1, 8, 128>}, {transform_indices = @transform_1, window_bounds = array<i64: 1, 4, 128>}, {pipeline_mode = #tpu.pipeline_mode<synchronous>, transform_indices = @transform_2, window_bounds = array<i64: 64, 8>}, {pipeline_mode = #tpu.pipeline_mode<synchronous>, transform_indices = @transform_3, window_bounds = array<i64: 64, 4>}, {pipeline_mode = #tpu.pipeline_mode<synchronous>, transform_indices = @transform_4, window_bounds = array<i64: 64, 1>}, {pipeline_mode = #tpu.pipeline_mode<synchronous>, transform_indices = @transform_5, window_bounds = array<i64: 32, 64>}, {pipeline_mode = #tpu.pipeline_mode<synchronous>, transform_indices = @transform_6, window_bounds = array<i64: 32, 1>}, {transform_indices = @transform_7, window_bounds = array<i64: 1, 32, 128>}]} {
    %c0 = arith.constant 0 : index
    %c0_0 = arith.constant 0 : index
    %c0_1 = arith.constant 0 : index
    %0 = vector.load %arg2[%c0, %c0_0, %c0_1] : memref<1x8x128xf32, #tpu.memory_space<vmem>>, vector<1x8x128xf32>
    %1 = vector.shape_cast %0 : vector<1x8x128xf32> to vector<8x128xf32>
    %2 = arith.truncf %1 : vector<8x128xf32> to vector<8x128xbf16>
    %c0_2 = arith.constant 0 : index
    %c0_3 = arith.constant 0 : index
    %3 = vector.load %arg4[%c0_2, %c0_3] : memref<64x8xbf16, #tpu.memory_space<vmem>>, vector<64x8xbf16>
    %cst = arith.constant dense<0.000000e+00> : vector<64x128xf32>
    %4 = tpu.matmul %3, %2, %cst {dimension_numbers = #tpu.dot_dimension_numbers<[1], [0], [0], [1], [0, 0, 1, 1], [], []>} : vector<64x8xbf16>, vector<8x128xbf16>, vector<64x128xf32> -> vector<64x128xf32>
    %c0_4 = arith.constant 0 : index
    %c0_5 = arith.constant 0 : index
    %c0_6 = arith.constant 0 : index
    %5 = vector.load %arg3[%c0_4, %c0_5, %c0_6] : memref<1x4x128xf32, #tpu.memory_space<vmem>>, vector<1x4x128xf32>
    %6 = vector.shape_cast %5 : vector<1x4x128xf32> to vector<4x128xf32>
    %7 = arith.truncf %6 : vector<4x128xf32> to vector<4x128xbf16>
    %c0_7 = arith.constant 0 : index
    %c0_8 = arith.constant 0 : index
    %8 = vector.load %arg5[%c0_7, %c0_8] : memref<64x4xbf16, #tpu.memory_space<vmem>>, vector<64x4xbf16>
    %cst_9 = arith.constant dense<0.000000e+00> : vector<64x128xf32>
    %9 = tpu.matmul %8, %7, %cst_9 {dimension_numbers = #tpu.dot_dimension_numbers<[1], [0], [0], [1], [0, 0, 1, 1], [], []>} : vector<64x4xbf16>, vector<4x128xbf16>, vector<64x128xf32> -> vector<64x128xf32>
    %10 = arith.addf %4, %9 : vector<64x128xf32>
    %c0_10 = arith.constant 0 : index
    %c0_11 = arith.constant 0 : index
    %11 = vector.load %arg6[%c0_10, %c0_11] : memref<64x1xf32, #tpu.memory_space<vmem>>, vector<64x1xf32>
    %12 = vector.broadcast %11 : vector<64x1xf32> to vector<64x128xf32>
    %13 = arith.addf %10, %12 : vector<64x128xf32>
    %cst_12 = arith.constant 0.000000e+00 : f32
    %14 = vector.broadcast %cst_12 : f32 to vector<64x128xf32>
    %15 = arith.maximumf %13, %14 : vector<64x128xf32>
    %c0_13 = arith.constant 0 : index
    %c0_14 = arith.constant 0 : index
    %16 = vector.load %arg7[%c0_13, %c0_14] : memref<32x64xbf16, #tpu.memory_space<vmem>>, vector<32x64xbf16>
    %c0_15 = arith.constant 0 : index
    %c0_16 = arith.constant 0 : index
    %17 = vector.load %arg8[%c0_15, %c0_16] : memref<32x1xf32, #tpu.memory_space<vmem>>, vector<32x1xf32>
    %18 = arith.truncf %15 : vector<64x128xf32> to vector<64x128xbf16>
    %cst_17 = arith.constant dense<0.000000e+00> : vector<32x128xf32>
    %19 = tpu.matmul %16, %18, %cst_17 {dimension_numbers = #tpu.dot_dimension_numbers<[1], [0], [0], [1], [0, 0, 1, 1], [], []>} : vector<32x64xbf16>, vector<64x128xbf16>, vector<32x128xf32> -> vector<32x128xf32>
    %20 = vector.broadcast %17 : vector<32x1xf32> to vector<32x128xf32>
    %21 = arith.addf %19, %20 : vector<32x128xf32>
    %cst_18 = arith.constant 0.000000e+00 : f32
    %22 = vector.broadcast %cst_18 : f32 to vector<32x128xf32>
    %23 = arith.maximumf %21, %22 : vector<32x128xf32>
    %24 = arith.truncf %23 : vector<32x128xf32> to vector<32x128xbf16>
    %c0_19 = arith.constant 0 : index
    %c0_20 = arith.constant 0 : index
    %c0_21 = arith.constant 0 : index
    %25 = vector.load %arg9[%c0_19, %c0_20, %c0_21] : memref<1x32x128xbf16, #tpu.memory_space<vmem>>, vector<1x32x128xbf16>
    %26 = vector.shape_cast %25 : vector<1x32x128xbf16> to vector<32x128xbf16>
    %27 = vector.shape_cast %24 : vector<32x128xbf16> to vector<1x32x128xbf16>
    tpu.vector_store %arg9[%c0_19, %c0_20, %c0_21], %27 {strides = array<i32>} : memref<1x32x128xbf16, #tpu.memory_space<vmem>>, vector<1x32x128xbf16>,
    return
  }
  func.func @transform_0(%arg0: i32, %arg1: i32) -> (i32, i32, i32) {
    %c0_i32 = arith.constant 0 : i32
    %c0_i32_0 = arith.constant 0 : i32
    return %arg0, %c0_i32, %arg1 : i32, i32, i32
  }
  func.func @transform_1(%arg0: i32, %arg1: i32) -> (i32, i32, i32) {
    %c0_i32 = arith.constant 0 : i32
    %c0_i32_0 = arith.constant 0 : i32
    return %arg0, %c0_i32, %arg1 : i32, i32, i32
  }
  func.func @transform_2(%arg0: i32, %arg1: i32) -> (i32, i32) {
    %c0_i32 = arith.constant 0 : i32
    %c0_i32_0 = arith.constant 0 : i32
    %c0_i32_1 = arith.constant 0 : i32
    return %c0_i32, %c0_i32_0 : i32, i32
  }
  func.func @transform_3(%arg0: i32, %arg1: i32) -> (i32, i32) {
    %c0_i32 = arith.constant 0 : i32
    %c0_i32_0 = arith.constant 0 : i32
    %c0_i32_1 = arith.constant 0 : i32
    return %c0_i32, %c0_i32_0 : i32, i32
  }
  func.func @transform_4(%arg0: i32, %arg1: i32) -> (i32, i32) {
    %c0_i32 = arith.constant 0 : i32
    %c0_i32_0 = arith.constant 0 : i32
    %c0_i32_1 = arith.constant 0 : i32
    return %c0_i32, %c0_i32_0 : i32, i32
  }
  func.func @transform_5(%arg0: i32, %arg1: i32) -> (i32, i32) {
    %c0_i32 = arith.constant 0 : i32
    %c0_i32_0 = arith.constant 0 : i32
    %c0_i32_1 = arith.constant 0 : i32
    return %c0_i32, %c0_i32_0 : i32, i32
  }
  func.func @transform_6(%arg0: i32, %arg1: i32) -> (i32, i32) {
    %c0_i32 = arith.constant 0 : i32
    %c0_i32_0 = arith.constant 0 : i32
    %c0_i32_1 = arith.constant 0 : i32
    return %c0_i32, %c0_i32_0 : i32, i32
  }
  func.func @transform_7(%arg0: i32, %arg1: i32) -> (i32, i32, i32) {
    %c0_i32 = arith.constant 0 : i32
    %c0_i32_0 = arith.constant 0 : i32
    return %arg0, %c0_i32, %arg1 : i32, i32, i32
  }
}

</mosaic_0001>

<llo_original>
// kernel: tpu_custom_call.1
$region0: #{tpu_custom_call.1}
  #allocation0 [shape = 'u32[]', space=smem, size = 0x4, offset = 0x4, fixed_abs, tag = 'smem constant byte address 0x4 - core index']
  #allocation1 [shape = 'u32[144,128]{1,0:T(1,128)}', space=vmem, size = 0x12000, scoped, tag = 'internal scratch']
  %s0 = inlined_call_operand.vmem [shape: f32[2,8,16], index: 0, kind: input, shape index: {}]
  %s1 = inlined_call_operand.vmem [shape: f32[2,4,16], index: 1, kind: input, shape index: {}]
  %s2 = inlined_call_operand.vmem [shape: bf16[64,8], index: 2, kind: input, shape index: {}]
  %s3 = inlined_call_operand.vmem [shape: bf16[64,4], index: 3, kind: input, shape index: {}]
  %s4 = inlined_call_operand.vmem [shape: f32[64,1], index: 4, kind: input, shape index: {}]
  %s5 = inlined_call_operand.vmem [shape: bf16[32,64], index: 5, kind: input, shape index: {}]
  %s6 = inlined_call_operand.vmem [shape: f32[32,1], index: 6, kind: input, shape index: {}]
  %s7 = inlined_call_operand.vmem [shape: bf16[2,32,16], index: 7, kind: output, shape index: {}]
  %s8 = sld [smem:[#allocation0]]
  $region61: #{tpu_custom_call.1} parent=0
    _
  %s10 = ssub.s32 1, %s8
  %s11 = scalar_select 0, %s10, %s8
  loop: start=0, step=1, limit=4
  $region2: #{tpu_custom_call.1} parent=0 // loop_pre_header
    _
  $region3: #{tpu_custom_call.1} parent=0 // loop_header
    %s13 = sphi 0, %s17
    %p14 = scmp.ge.s32.totalorder %s13, 4
    %s20 = sphi 0, %s32
    %s21 = sphi 0, %s28
    %s22 = sphi 0, %s20
    %s23 = sphi 0, %s21
    %s24 = sphi 0, %s22
    %s25 = sphi 0, %s23
    %s37 = sphi 0, %s39
    %s40 = sphi 0, %s37
    %s41 = sphi 0, %s40
    %s57 = sphi 0, %s41
    %s65 = sphi 0, %s67
    %s68 = sphi 0, %s65
    %s69 = sphi 0, %s68
    %s85 = sphi 0, %s69
    %s89 = sphi 0, %s89
    %s91 = sphi 0, %s89
    %s92 = sphi 0, %s91
    %s106 = sphi 0, %s92
    %s110 = sphi 0, %s110
    %s112 = sphi 0, %s110
    %s113 = sphi 0, %s112
    %s127 = sphi 0, %s113
    %s131 = sphi 0, %s131
    %s133 = sphi 0, %s131
    %s134 = sphi 0, %s133
    %s148 = sphi 0, %s134
    %s152 = sphi 0, %s152
    %s154 = sphi 0, %s152
    %s155 = sphi 0, %s154
    %s169 = sphi 0, %s155
    %s173 = sphi 0, %s173
    %s175 = sphi 0, %s173
    %s176 = sphi 0, %s175
    %s190 = sphi 0, %s176
    %s198 = sphi 0, %s200
    %s201 = sphi 0, %s198
    %s202 = sphi 0, %s201
    %s218 = sphi 0, %s202
  $region4: #{tpu_custom_call.1} parent=0 // loop_header_branch
    %16 = sbr.rel (%p14) target = $region8
  $region5: #{tpu_custom_call.1} parent=0 // loop_body
    %s18 = ssub.s32 %s13, 1
    %s19 = ssub.s32 %s13, 2
    %s26 = sadd.s32 1, %s21
    %p27 = scmp.ge.s32.totalorder %s26, 1
    %s28 = scalar_select %p27, 0, %s26
    %s29 = sadd.s32 1, %s20
    %s30 = scalar_select %p27, %s29, %s20
    %p31 = scmp.ge.s32.totalorder %s30, 2
    %s32 = scalar_select %p31, 0, %s30
    %s33 = ssub.s32 %s20, %s32
    %s34 = ssub.s32 %s21, %s28
    %s35 = sor.u32 %s33, %s34
    %p36 = scmp.eq.s32.totalorder %s35, 0
    %s38 = sadd.s32 %s37, 1
    %s39 = scalar_select %p36, %s37, %s38
    %p42 = pneg %p36
    %p43 = scmp.eq.s32.totalorder %s13, 1
    %p44 = por %p42, %p43
    %p45 = scmp.ne.s32.totalorder %s37, %s40
    %p46 = scmp.eq.s32.totalorder %s13, 0
    %p47 = por %p45, %p46
    %p48 = scmp.ne.s32.totalorder %s37, %s40
    %p49 = scmp.eq.s32.totalorder %s18, 1
    %p50 = por %p48, %p49
    %p51 = scmp.ne.s32.totalorder %s40, %s41
    %p52 = scmp.eq.s32.totalorder %s18, 0
    %p53 = por %p51, %p52
    %p54 = scmp.ne.s32.totalorder %s40, %s41
    %p55 = scmp.eq.s32.totalorder %s19, 1
    %p56 = por %p54, %p55
    %p58 = scmp.ne.s32.totalorder %s41, %s57
    %p59 = scmp.eq.s32.totalorder %s19, 0
    %p60 = por %p58, %p59
    %s61 = ssub.s32 %s20, %s32
    %s62 = ssub.s32 %s21, %s28
    %s63 = sor.u32 %s61, %s62
    %p64 = scmp.eq.s32.totalorder %s63, 0
    %s66 = sadd.s32 %s65, 1
    %s67 = scalar_select %p64, %s65, %s66
    %p70 = pneg %p64
    %p71 = scmp.eq.s32.totalorder %s13, 1
    %p72 = por %p70, %p71
    %p73 = scmp.ne.s32.totalorder %s65, %s68
    %p74 = scmp.eq.s32.totalorder %s13, 0
    %p75 = por %p73, %p74
    %p76 = scmp.ne.s32.totalorder %s65, %s68
    %p77 = scmp.eq.s32.totalorder %s18, 1
    %p78 = por %p76, %p77
    %p79 = scmp.ne.s32.totalorder %s68, %s69
    %p80 = scmp.eq.s32.totalorder %s18, 0
    %p81 = por %p79, %p80
    %p82 = scmp.ne.s32.totalorder %s68, %s69
    %p83 = scmp.eq.s32.totalorder %s19, 1
    %p84 = por %p82, %p83
    %p86 = scmp.ne.s32.totalorder %s69, %s85
    %p87 = scmp.eq.s32.totalorder %s19, 0
    %p88 = por %p86, %p87
    %s90 = sadd.s32 %s89, 1
    %p93 = scmp.eq.s32.totalorder %s13, 1
    %p94 = scmp.ne.s32.totalorder %s89, %s91
    %p95 = scmp.eq.s32.totalorder %s13, 0
    %p96 = por %p94, %p95
    %p97 = scmp.ne.s32.totalorder %s89, %s91
    %p98 = scmp.eq.s32.totalorder %s18, 1
    %p99 = por %p97, %p98
    %p100 = scmp.ne.s32.totalorder %s91, %s92
    %p101 = scmp.eq.s32.totalorder %s18, 0
    %p102 = por %p100, %p101
    %p103 = scmp.ne.s32.totalorder %s91, %s92
    %p104 = scmp.eq.s32.totalorder %s19, 1
    %p105 = por %p103, %p104
    %p107 = scmp.ne.s32.totalorder %s92, %s106
    %p108 = scmp.eq.s32.totalorder %s19, 0
    %p109 = por %p107, %p108
    %s111 = sadd.s32 %s110, 1
    %p114 = scmp.eq.s32.totalorder %s13, 1
    %p115 = scmp.ne.s32.totalorder %s110, %s112
    %p116 = scmp.eq.s32.totalorder %s13, 0
    %p117 = por %p115, %p116
    %p118 = scmp.ne.s32.totalorder %s110, %s112
    %p119 = scmp.eq.s32.totalorder %s18, 1
    %p120 = por %p118, %p119
    %p121 = scmp.ne.s32.totalorder %s112, %s113
    %p122 = scmp.eq.s32.totalorder %s18, 0
    %p123 = por %p121, %p122
    %p124 = scmp.ne.s32.totalorder %s112, %s113
    %p125 = scmp.eq.s32.totalorder %s19, 1
    %p126 = por %p124, %p125
    %p128 = scmp.ne.s32.totalorder %s113, %s127
    %p129 = scmp.eq.s32.totalorder %s19, 0
    %p130 = por %p128, %p129
    %s132 = sadd.s32 %s131, 1
    %p135 = scmp.eq.s32.totalorder %s13, 1
    %p136 = scmp.ne.s32.totalorder %s131, %s133
    %p137 = scmp.eq.s32.totalorder %s13, 0
    %p138 = por %p136, %p137
    %p139 = scmp.ne.s32.totalorder %s131, %s133
    %p140 = scmp.eq.s32.totalorder %s18, 1
    %p141 = por %p139, %p140
    %p142 = scmp.ne.s32.totalorder %s133, %s134
    %p143 = scmp.eq.s32.totalorder %s18, 0
    %p144 = por %p142, %p143
    %p145 = scmp.ne.s32.totalorder %s133, %s134
    %p146 = scmp.eq.s32.totalorder %s19, 1
    %p147 = por %p145, %p146
    %p149 = scmp.ne.s32.totalorder %s134, %s148
    %p150 = scmp.eq.s32.totalorder %s19, 0
    %p151 = por %p149, %p150
    %s153 = sadd.s32 %s152, 1
    %p156 = scmp.eq.s32.totalorder %s13, 1
    %p157 = scmp.ne.s32.totalorder %s152, %s154
    %p158 = scmp.eq.s32.totalorder %s13, 0
    %p159 = por %p157, %p158
    %p160 = scmp.ne.s32.totalorder %s152, %s154
    %p161 = scmp.eq.s32.totalorder %s18, 1
    %p162 = por %p160, %p161
    %p163 = scmp.ne.s32.totalorder %s154, %s155
    %p164 = scmp.eq.s32.totalorder %s18, 0
    %p165 = por %p163, %p164
    %p166 = scmp.ne.s32.totalorder %s154, %s155
    %p167 = scmp.eq.s32.totalorder %s19, 1
    %p168 = por %p166, %p167
    %p170 = scmp.ne.s32.totalorder %s155, %s169
    %p171 = scmp.eq.s32.totalorder %s19, 0
    %p172 = por %p170, %p171
    %s174 = sadd.s32 %s173, 1
    %p177 = scmp.eq.s32.totalorder %s13, 1
    %p178 = scmp.ne.s32.totalorder %s173, %s175
    %p179 = scmp.eq.s32.totalorder %s13, 0
    %p180 = por %p178, %p179
    %p181 = scmp.ne.s32.totalorder %s173, %s175
    %p182 = scmp.eq.s32.totalorder %s18, 1
    %p183 = por %p181, %p182
    %p184 = scmp.ne.s32.totalorder %s175, %s176
    %p185 = scmp.eq.s32.totalorder %s18, 0
    %p186 = por %p184, %p185
    %p187 = scmp.ne.s32.totalorder %s175, %s176
    %p188 = scmp.eq.s32.totalorder %s19, 1
    %p189 = por %p187, %p188
    %p191 = scmp.ne.s32.totalorder %s176, %s190
    %p192 = scmp.eq.s32.totalorder %s19, 0
    %p193 = por %p191, %p192
    %s194 = ssub.s32 %s20, %s32
    %s195 = ssub.s32 %s21, %s28
    %s196 = sor.u32 %s194, %s195
    %p197 = scmp.eq.s32.totalorder %s196, 0
    %s199 = sadd.s32 %s198, 1
    %s200 = scalar_select %p197, %s198, %s199
    %p203 = pneg %p197
    %p204 = scmp.eq.s32.totalorder %s13, 1
    %p205 = por %p203, %p204
    %p206 = scmp.ne.s32.totalorder %s198, %s201
    %p207 = scmp.eq.s32.totalorder %s13, 0
    %p208 = por %p206, %p207
    %p209 = scmp.ne.s32.totalorder %s198, %s201
    %p210 = scmp.eq.s32.totalorder %s18, 1
    %p211 = por %p209, %p210
    %p212 = scmp.ne.s32.totalorder %s201, %s202
    %p213 = scmp.eq.s32.totalorder %s18, 0
    %p214 = por %p212, %p213
    %p215 = scmp.ne.s32.totalorder %s201, %s202
    %p216 = scmp.eq.s32.totalorder %s19, 1
    %p217 = por %p215, %p216
    %p219 = scmp.ne.s32.totalorder %s202, %s218
    %p220 = scmp.eq.s32.totalorder %s19, 0
    %p221 = por %p219, %p220
    %p222 = scmp.le.s32.totalorder 1, %s13
    %p223 = scmp.lt.s32.totalorder %s13, 3
    %p224 = pnand %p222, %p223
    %p225 = pneg %p224
    // Predicated region
    $region9: #{tpu_custom_call.1} parent=5 // pred_check
      _
    $region10: #{tpu_custom_call.1} parent=5 // pred_check_branch
      %227 = sbr.rel (%p224) target = $region12
    $region11: #{tpu_custom_call.1} parent=5 // pred_region
      %s228 = ssub.s32 %s13, 1
      // Predicated region
      $region13: #{tpu_custom_call.1} parent=11 // pred_check
        %p229 = pneg %p102
      $region14: #{tpu_custom_call.1} parent=11 // pred_check_branch
        %231 = sbr.rel (%p229) target = $region16
      $region15: #{tpu_custom_call.1} parent=11 // pred_region
        _
      $region16: #{tpu_custom_call.1} parent=11 // pred_fallthru
        _
      // Predicated region
      $region17: #{tpu_custom_call.1} parent=11 // pred_check
        %p232 = pneg %p123
      $region18: #{tpu_custom_call.1} parent=11 // pred_check_branch
        %234 = sbr.rel (%p232) target = $region20
      $region19: #{tpu_custom_call.1} parent=11 // pred_region
        _
      $region20: #{tpu_custom_call.1} parent=11 // pred_fallthru
        _
      // Predicated region
      $region21: #{tpu_custom_call.1} parent=11 // pred_check
        %p235 = pneg %p144
      $region22: #{tpu_custom_call.1} parent=11 // pred_check_branch
        %237 = sbr.rel (%p235) target = $region24
      $region23: #{tpu_custom_call.1} parent=11 // pred_region
        _
      $region24: #{tpu_custom_call.1} parent=11 // pred_fallthru
        _
      // Predicated region
      $region25: #{tpu_custom_call.1} parent=11 // pred_check
        %p238 = pneg %p165
      $region26: #{tpu_custom_call.1} parent=11 // pred_check_branch
        %240 = sbr.rel (%p238) target = $region28
      $region27: #{tpu_custom_call.1} parent=11 // pred_region
        _
      $region28: #{tpu_custom_call.1} parent=11 // pred_fallthru
        _
      // Predicated region
      $region29: #{tpu_custom_call.1} parent=11 // pred_check
        %p241 = pneg %p186
      $region30: #{tpu_custom_call.1} parent=11 // pred_check_branch
        %243 = sbr.rel (%p241) target = $region32
      $region31: #{tpu_custom_call.1} parent=11 // pred_region
        _
      $region32: #{tpu_custom_call.1} parent=11 // pred_fallthru
        _
    $region12: #{tpu_custom_call.1} parent=5 // pred_fallthru
      _
    %p244 = scmp.lt.s32.totalorder %s13, 2
    // Predicated region
    $region33: #{tpu_custom_call.1} parent=5 // pred_check
      %p245 = pneg %p244
    $region34: #{tpu_custom_call.1} parent=5 // pred_check_branch
      %247 = sbr.rel (%p245) target = $region36
    $region35: #{tpu_custom_call.1} parent=5 // pred_region
      // Predicated region
      $region37: #{tpu_custom_call.1} parent=35 // pred_check
        %p248 = pneg %p47
      $region38: #{tpu_custom_call.1} parent=35 // pred_check_branch
        %250 = sbr.rel (%p248) target = $region40
      $region39: #{tpu_custom_call.1} parent=35 // pred_region
        %p251 = scmp.lt.s32.totalorder %s20, 1
        %s252 = scalar_select %p251, %s20, 1
        %p253 = scmp.lt.s32.totalorder %s21, 0
        %s254 = scalar_select %p253, %s21, 0
        %s255 = sadd.s32 %s254, %s252
        %s256 = smul.addr %s255, 8
        %s257 = scalar_lea.vmem %s0, %s256
      $region40: #{tpu_custom_call.1} parent=35 // pred_fallthru
        _
      // Predicated region
      $region41: #{tpu_custom_call.1} parent=35 // pred_check
        %p258 = pneg %p75
      $region42: #{tpu_custom_call.1} parent=35 // pred_check_branch
        %260 = sbr.rel (%p258) target = $region44
      $region43: #{tpu_custom_call.1} parent=35 // pred_region
        %p261 = scmp.lt.s32.totalorder %s20, 1
        %s262 = scalar_select %p261, %s20, 1
        %p263 = scmp.lt.s32.totalorder %s21, 0
        %s264 = scalar_select %p263, %s21, 0
        %s265 = sadd.s32 %s264, %s262
        %s266 = smul.addr %s265, 4
        %s267 = scalar_lea.vmem %s1, %s266
      $region44: #{tpu_custom_call.1} parent=35 // pred_fallthru
        _
    $region36: #{tpu_custom_call.1} parent=5 // pred_fallthru
      _
    %p268 = scmp.le.s32.totalorder 1, %s13
    %p269 = scmp.lt.s32.totalorder %s13, 3
    %p270 = pnand %p268, %p269
    %p271 = pneg %p270
    // Predicated region
    $region45: #{tpu_custom_call.1} parent=5 // pred_check
      _
    $region46: #{tpu_custom_call.1} parent=5 // pred_check_branch
      %273 = sbr.rel (%p270) target = $region48
    $region47: #{tpu_custom_call.1} parent=5 // pred_region
      %s274 = ssub.s32 %s13, 1
      %p275 = scmp.lt.s32.totalorder %s22, 1
      %s276 = scalar_select %p275, %s22, 1
      %p277 = scmp.lt.s32.totalorder %s23, 0
      %s278 = scalar_select %p277, %s23, 0
      %s279 = sadd.s32 %s278, %s276
      %s280 = smul.addr %s279, 8
      %s281 = scalar_lea.vmem %s0, %s280
      %p282 = pneg %p53
      %p283 = pneg %p50
      %p284 = scmp.lt.s32.totalorder %s22, 1
      %s285 = scalar_select %p284, %s22, 1
      %p286 = scmp.lt.s32.totalorder %s23, 0
      %s287 = scalar_select %p286, %s23, 0
      %s288 = sadd.s32 %s287, %s285
      %s289 = smul.addr %s288, 4
      %s290 = scalar_lea.vmem %s1, %s289
      %p291 = pneg %p81
      %p292 = pneg %p78
      %p293 = pneg %p102
      %p294 = pneg %p99
      %p295 = pneg %p123
      %p296 = pneg %p120
      %p297 = pneg %p144
      %p298 = pneg %p141
      %p299 = pneg %p165
      %p300 = pneg %p162
      %p301 = pneg %p186
      %p302 = pneg %p183
      %p303 = pneg %p214
      %p304 = pneg %p211
      %p305 = scmp.lt.s32.totalorder %s22, 1
      %s306 = scalar_select %p305, %s22, 1
      %p307 = scmp.lt.s32.totalorder %s23, 0
      %s308 = scalar_select %p307, %s23, 0
      %s309 = smul.addr %s306, 4
      %s310 = sadd.s32 %s308, %s309
      %s311 = smul.addr %s310, 4
      %s312 = scalar_lea.vmem %s7, %s311
      %p313 = scmp.lt.s32.totalorder %s22, 1
      %s314 = scalar_select %p313, %s22, 1
      %p315 = scmp.lt.s32.totalorder %s23, 0
      %s316 = scalar_select %p315, %s23, 0
      %s317 = sadd.s32 %s316, %s314
      %s318 = smul.addr %s317, 8
      %s319 = scalar_lea.vmem %s0, %s318
      %p320 = scmp.lt.s32.totalorder %s22, 1
      %s321 = scalar_select %p320, %s22, 1
      %p322 = scmp.lt.s32.totalorder %s23, 0
      %s323 = scalar_select %p322, %s23, 0
      %s324 = sadd.s32 %s323, %s321
      %s325 = smul.addr %s324, 4
      %s326 = scalar_lea.vmem %s1, %s325
      %p327 = scmp.lt.s32.totalorder %s22, 1
      %s328 = scalar_select %p327, %s22, 1
      %p329 = scmp.lt.s32.totalorder %s23, 0
      %s330 = scalar_select %p329, %s23, 0
      %s331 = smul.addr %s328, 4
      %s332 = sadd.s32 %s330, %s331
      %s333 = smul.addr %s332, 4
      %s334 = scalar_lea.vmem %s7, %s333
      %v336 = vld [vmem:[%s319] sm:$0xff]
      %v337 = vpack.c.bf16 %v336, %v336
      %v338 = vld [vmem:[%s2] sm:$0xf]
      %v339 = vld [vmem:[%s2 + $0x4] sm:$0xf]
      %v340 = vld [vmem:[%s2 + $0x8] sm:$0xf]
      %v341 = vld [vmem:[%s2 + $0xc] sm:$0xf]
      %v342 = vld [vmem:[%s2 + $0x10] sm:$0xf]
      %v343 = vld [vmem:[%s2 + $0x14] sm:$0xf]
      %v344 = vld [vmem:[%s2 + $0x18] sm:$0xf]
      %v345 = vld [vmem:[%s2 + $0x1c] sm:$0xf]
      %v346 = vld [vmem:[%s326] sm:$0xf]
      %v347 = vpack.c.bf16 %v346, %v346
      %v348 = vld [vmem:[%s3] sm:$0xf]
      %v349 = vld [vmem:[%s3 + $0x4] sm:$0xf]
      %v350 = vld [vmem:[%s3 + $0x8] sm:$0xf]
      %v351 = vld [vmem:[%s3 + $0xc] sm:$0xf]
      %v352 = vld [vmem:[%s3 + $0x10] sm:$0xf]
      %v353 = vld [vmem:[%s3 + $0x14] sm:$0xf]
      %v354 = vld [vmem:[%s3 + $0x18] sm:$0xf]
      %v355 = vld [vmem:[%s3 + $0x1c] sm:$0xf]
      %v364 = vunpack.c.l.b16 %v348
      %v365 = vunpack.c.l.b16 %v349
      %v366 = vunpack.c.l.b16 %v350
      %v367 = vunpack.c.l.b16 %v351
      %v368 = vunpack.c.l.b16 %v352
      %v369 = vunpack.c.l.b16 %v353
      %v370 = vunpack.c.l.b16 %v354
      %v371 = vunpack.c.l.b16 %v355
      %v372 = vpack.c.b16 %v365, %v364
      %v373 = vpack.c.b16 %v367, %v366
      %v374 = vpack.c.b16 %v369, %v368
      %v375 = vpack.c.b16 %v371, %v370
      %vm376 = vcmask 31744
      %v378 = vsel %vm376, %v372, 0
      %v381 = vsel %vm376, %v373, 0
      %v384 = vsel %vm376, %v374, 0
      %v387 = vsel %vm376, %v375, 0
      %vm389 = vcmask 1041408
      %v391 = vsel %vm389, %v347, 0
      %393 = vmatprep.subr.bf16.mxu0 0
      %394 = vmatpush1.bf16.msra.mxu0 %v391
      %395 = vmatprep.subr.bf16.mxu0 0
      %396 = vmatpush1.bf16.msra.mxu0 0
      %397 = vmatprep.subr.bf16.mxu0 0
      %398 = vmatpush1.bf16.msra.mxu0 0
      %399 = vmatprep.subr.bf16.mxu0 0
      %400 = vmatpush1.bf16.msra.mxu0 0
      %401 = vmatprep.subr.bf16.mxu0 0
      %402 = vmatpush1.bf16.msra.mxu0 0
      %403 = vmatprep.subr.bf16.mxu0 0
      %404 = vmatpush1.bf16.msra.mxu0 0
      %405 = vmatprep.subr.bf16.mxu0 0
      %406 = vmatpush1.bf16.msra.mxu0 0
      %407 = vmatprep.subr.bf16.mxu0 0
      %408 = vmatpush1.bf16.msra.mxu0 0
      %409 = vmatprep.subr.bf16.mxu0 0
      %410 = vmatpush1.bf16.msra.mxu0 0
      %411 = vmatprep.subr.bf16.mxu0 0
      %412 = vmatpush1.bf16.msra.mxu0 0
      %413 = vmatprep.subr.bf16.mxu0 0
      %414 = vmatpush1.bf16.msra.mxu0 0
      %415 = vmatprep.subr.bf16.mxu0 0
      %416 = vmatpush1.bf16.msra.mxu0 0
      %417 = vmatprep.subr.bf16.mxu0 0
      %418 = vmatpush1.bf16.msra.mxu0 0
      %419 = vmatprep.subr.bf16.mxu0 0
      %420 = vmatpush1.bf16.msra.mxu0 0
      %421 = vmatprep.subr.bf16.mxu0 0
      %422 = vmatpush1.bf16.msra.mxu0 0
      %423 = vmatprep.subr.bf16.mxu0 0
      %424 = vmatpush1.bf16.msra.mxu0 0
      %425 = vmatprep.mubr.bf16.mxu0 0
      %426 = vmatmul.mubr.bf16.gmra.mrb[0].mxu0 %v378
      %v427 = vpop.f32.mrb[0].mxu0
      %v428 = vadd.f32 0.0, %v427
      %v429 = vpop.f32.mrb[0].mxu0
      %v430 = vpop.f32.mrb[0].mxu0
      %v431 = vadd.f32 0.0, %v430
      %v432 = vpop.f32.mrb[0].mxu0
      %433 = vmatprep.mubr.bf16.mxu0 0
      %434 = vmatmul.mubr.bf16.gmra.mrb[0].mxu0 %v381
      %v435 = vpop.f32.mrb[0].mxu0
      %v436 = vadd.f32 0.0, %v435
      %v437 = vpop.f32.mrb[0].mxu0
      %v438 = vpop.f32.mrb[0].mxu0
      %v439 = vadd.f32 0.0, %v438
      %v440 = vpop.f32.mrb[0].mxu0
      %441 = vmatprep.mubr.bf16.mxu0 0
      %442 = vmatmul.mubr.bf16.gmra.mrb[0].mxu0 %v384
      %v443 = vpop.f32.mrb[0].mxu0
      %v444 = vadd.f32 0.0, %v443
      %v445 = vpop.f32.mrb[0].mxu0
      %v446 = vpop.f32.mrb[0].mxu0
      %v447 = vadd.f32 0.0, %v446
      %v448 = vpop.f32.mrb[0].mxu0
      %449 = vmatprep.mubr.bf16.mxu0 0
      %450 = vmatmul.mubr.bf16.gmra.mrb[0].mxu0 %v387
      %v451 = vpop.f32.mrb[0].mxu0
      %v452 = vadd.f32 0.0, %v451
      %v453 = vpop.f32.mrb[0].mxu0
      %v454 = vpop.f32.mrb[0].mxu0
      %v455 = vadd.f32 0.0, %v454
      %v456 = vpop.f32.mrb[0].mxu0
      %457 = vdwg.mxu0
      %v466 = vunpack.c.l.b16 %v338
      %v467 = vunpack.c.l.b16 %v339
      %v468 = vunpack.c.l.b16 %v340
      %v469 = vunpack.c.l.b16 %v341
      %v470 = vunpack.c.l.b16 %v342
      %v471 = vunpack.c.l.b16 %v343
      %v472 = vunpack.c.l.b16 %v344
      %v473 = vunpack.c.l.b16 %v345
      %v474 = vpack.c.b16 %v467, %v466
      %v475 = vpack.c.b16 %v469, %v468
      %v476 = vpack.c.b16 %v471, %v470
      %v477 = vpack.c.b16 %v473, %v472
      %vm478 = vcmask 64512
      %v480 = vsel %vm478, %v474, 0
      %v483 = vsel %vm478, %v475, 0
      %v486 = vsel %vm478, %v476, 0
      %v489 = vsel %vm478, %v477, 0
      %vm491 = vcmask 1043456
      %v493 = vsel %vm491, %v337, 0
      %495 = vmatprep.subr.bf16.mxu0 0
      %496 = vmatpush1.bf16.msra.mxu0 %v493
      %497 = vmatprep.subr.bf16.mxu0 0
      %498 = vmatpush1.bf16.msra.mxu0 0
      %499 = vmatprep.subr.bf16.mxu0 0
      %500 = vmatpush1.bf16.msra.mxu0 0
      %501 = vmatprep.subr.bf16.mxu0 0
      %502 = vmatpush1.bf16.msra.mxu0 0
      %503 = vmatprep.subr.bf16.mxu0 0
      %504 = vmatpush1.bf16.msra.mxu0 0
      %505 = vmatprep.subr.bf16.mxu0 0
      %506 = vmatpush1.bf16.msra.mxu0 0
      %507 = vmatprep.subr.bf16.mxu0 0
      %508 = vmatpush1.bf16.msra.mxu0 0
      %509 = vmatprep.subr.bf16.mxu0 0
      %510 = vmatpush1.bf16.msra.mxu0 0
      %511 = vmatprep.subr.bf16.mxu0 0
      %512 = vmatpush1.bf16.msra.mxu0 0
      %513 = vmatprep.subr.bf16.mxu0 0
      %514 = vmatpush1.bf16.msra.mxu0 0
      %515 = vmatprep.subr.bf16.mxu0 0
      %516 = vmatpush1.bf16.msra.mxu0 0
      %517 = vmatprep.subr.bf16.mxu0 0
      %518 = vmatpush1.bf16.msra.mxu0 0
      %519 = vmatprep.subr.bf16.mxu0 0
      %520 = vmatpush1.bf16.msra.mxu0 0
      %521 = vmatprep.subr.bf16.mxu0 0
      %522 = vmatpush1.bf16.msra.mxu0 0
      %523 = vmatprep.subr.bf16.mxu0 0
      %524 = vmatpush1.bf16.msra.mxu0 0
      %525 = vmatprep.subr.bf16.mxu0 0
      %526 = vmatpush1.bf16.msra.mxu0 0
      %527 = vmatprep.mubr.bf16.mxu0 0
      %528 = vmatmul.mubr.bf16.gmra.mrb[0].mxu0 %v480
      %v529 = vpop.f32.mrb[0].mxu0
      %v530 = vadd.f32 %v428, %v529
      %v531 = vpop.f32.mrb[0].mxu0
      %v532 = vpop.f32.mrb[0].mxu0
      %v533 = vadd.f32 %v431, %v532
      %v534 = vpop.f32.mrb[0].mxu0
      %535 = vmatprep.mubr.bf16.mxu0 0
      %536 = vmatmul.mubr.bf16.gmra.mrb[0].mxu0 %v483
      %v537 = vpop.f32.mrb[0].mxu0
      %v538 = vadd.f32 %v436, %v537
      %v539 = vpop.f32.mrb[0].mxu0
      %v540 = vpop.f32.mrb[0].mxu0
      %v541 = vadd.f32 %v439, %v540
      %v542 = vpop.f32.mrb[0].mxu0
      %543 = vmatprep.mubr.bf16.mxu0 0
      %544 = vmatmul.mubr.bf16.gmra.mrb[0].mxu0 %v486
      %v545 = vpop.f32.mrb[0].mxu0
      %v546 = vadd.f32 %v444, %v545
      %v547 = vpop.f32.mrb[0].mxu0
      %v548 = vpop.f32.mrb[0].mxu0
      %v549 = vadd.f32 %v447, %v548
      %v550 = vpop.f32.mrb[0].mxu0
      %551 = vmatprep.mubr.bf16.mxu0 0
      %552 = vmatmul.mubr.bf16.gmra.mrb[0].mxu0 %v489
      %v553 = vpop.f32.mrb[0].mxu0
      %v554 = vadd.f32 %v452, %v553
      %v555 = vpop.f32.mrb[0].mxu0
      %v556 = vpop.f32.mrb[0].mxu0
      %v557 = vadd.f32 %v455, %v556
      %v558 = vpop.f32.mrb[0].mxu0
      %559 = vdwg.mxu0
      %v560 = vld [vmem:[%s4] sm:$0xff]
      %v561 = vld [vmem:[%s4 + $0x8] sm:$0xff]
      %v562 = vld [vmem:[%s4 + $0x10] sm:$0xff]
      %v563 = vld [vmem:[%s4 + $0x18] sm:$0xff]
      %v564 = vld [vmem:[%s4 + $0x20] sm:$0xff]
      %v565 = vld [vmem:[%s4 + $0x28] sm:$0xff]
      %v566 = vld [vmem:[%s4 + $0x30] sm:$0xff]
      %v567 = vld [vmem:[%s4 + $0x38] sm:$0xff]
      %569 = vset.pattern.permute.xlu0 0
      %570 = vperm.xlu0 %569, %v560
      %v571 = vpop.permute.xlu0 %570
      %574 = vset.pattern.permute.xlu0 0
      %575 = vperm.xlu0 %574, %v561
      %v576 = vpop.permute.xlu0 %575
      %579 = vset.pattern.permute.xlu0 0
      %580 = vperm.xlu0 %579, %v562
      %v581 = vpop.permute.xlu0 %580
      %584 = vset.pattern.permute.xlu0 0
      %585 = vperm.xlu0 %584, %v563
      %v586 = vpop.permute.xlu0 %585
      %589 = vset.pattern.permute.xlu0 0
      %590 = vperm.xlu0 %589, %v564
      %v591 = vpop.permute.xlu0 %590
      %594 = vset.pattern.permute.xlu0 0
      %595 = vperm.xlu0 %594, %v565
      %v596 = vpop.permute.xlu0 %595
      %599 = vset.pattern.permute.xlu0 0
      %600 = vperm.xlu0 %599, %v566
      %v601 = vpop.permute.xlu0 %600
      %604 = vset.pattern.permute.xlu0 0
      %605 = vperm.xlu0 %604, %v567
      %v606 = vpop.permute.xlu0 %605
      %v608 = vadd.f32 %v530, %v571
      %v609 = vadd.f32 %v533, %v576
      %v610 = vadd.f32 %v538, %v581
      %v611 = vadd.f32 %v541, %v586
      %v612 = vadd.f32 %v546, %v591
      %v613 = vadd.f32 %v549, %v596
      %v614 = vadd.f32 %v554, %v601
      %v615 = vadd.f32 %v557, %v606
      %v616 = vmax.f32 %v608, 0.0
      %v617 = vmax.f32 %v609, 0.0
      %v618 = vmax.f32 %v610, 0.0
      %v619 = vmax.f32 %v611, 0.0
      %v620 = vmax.f32 %v612, 0.0
      %v621 = vmax.f32 %v613, 0.0
      %v622 = vmax.f32 %v614, 0.0
      %v623 = vmax.f32 %v615, 0.0
      %v624 = vld [vmem:[%s5] sm:$0xf]
      %v625 = vld [vmem:[%s5 + $0x4] sm:$0xf]
      %v626 = vld [vmem:[%s5 + $0x8] sm:$0xf]
      %v627 = vld [vmem:[%s5 + $0xc] sm:$0xf]
      %v628 = vld [vmem:[%s6] sm:$0xff]
      %v629 = vld [vmem:[%s6 + $0x8] sm:$0xff]
      %v630 = vld [vmem:[%s6 + $0x10] sm:$0xff]
      %v631 = vld [vmem:[%s6 + $0x18] sm:$0xff]
      %v632 = vpack.c.bf16 %v617, %v616
      %v633 = vpack.c.bf16 %v619, %v618
      %v634 = vpack.c.bf16 %v621, %v620
      %v635 = vpack.c.bf16 %v623, %v622
      %637 = vset.pattern.permute.xlu0 0
      %638 = vperm.xlu0 %637, %v628
      %v639 = vpop.permute.xlu0 %638
      %642 = vset.pattern.permute.xlu0 0
      %643 = vperm.xlu0 %642, %v629
      %v644 = vpop.permute.xlu0 %643
      %647 = vset.pattern.permute.xlu0 0
      %648 = vperm.xlu0 %647, %v630
      %v649 = vpop.permute.xlu0 %648
      %652 = vset.pattern.permute.xlu0 0
      %653 = vperm.xlu0 %652, %v631
      %v654 = vpop.permute.xlu0 %653
      %v660 = vunpack.c.l.b16 %v624
      %v661 = vunpack.c.l.b16 %v625
      %v662 = vunpack.c.l.b16 %v626
      %v663 = vunpack.c.l.b16 %v627
      %v664 = vpack.c.b16 %v661, %v660
      %v665 = vpack.c.b16 %v663, %v662
      %vm666 = vcmask 523264
      %v668 = vsel %vm666, %v664, 0
      %v671 = vsel %vm666, %v665, 0
      %673 = vmatprep.subr.bf16.mxu0 0
      %674 = vmatpush1.bf16.msra.mxu0 %v632
      %675 = vmatprep.subr.bf16.mxu0 0
      %676 = vmatpush1.bf16.msra.mxu0 %v633
      %677 = vmatprep.subr.bf16.mxu0 0
      %678 = vmatpush1.bf16.msra.mxu0 %v634
      %679 = vmatprep.subr.bf16.mxu0 0
      %680 = vmatpush1.bf16.msra.mxu0 %v635
      %681 = vmatprep.subr.bf16.mxu0 0
      %682 = vmatpush1.bf16.msra.mxu0 0
      %683 = vmatprep.subr.bf16.mxu0 0
      %684 = vmatpush1.bf16.msra.mxu0 0
      %685 = vmatprep.subr.bf16.mxu0 0
      %686 = vmatpush1.bf16.msra.mxu0 0
      %687 = vmatprep.subr.bf16.mxu0 0
      %688 = vmatpush1.bf16.msra.mxu0 0
      %689 = vmatprep.subr.bf16.mxu0 0
      %690 = vmatpush1.bf16.msra.mxu0 0
      %691 = vmatprep.subr.bf16.mxu0 0
      %692 = vmatpush1.bf16.msra.mxu0 0
      %693 = vmatprep.subr.bf16.mxu0 0
      %694 = vmatpush1.bf16.msra.mxu0 0
      %695 = vmatprep.subr.bf16.mxu0 0
      %696 = vmatpush1.bf16.msra.mxu0 0
      %697 = vmatprep.subr.bf16.mxu0 0
      %698 = vmatpush1.bf16.msra.mxu0 0
      %699 = vmatprep.subr.bf16.mxu0 0
      %700 = vmatpush1.bf16.msra.mxu0 0
      %701 = vmatprep.subr.bf16.mxu0 0
      %702 = vmatpush1.bf16.msra.mxu0 0
      %703 = vmatprep.subr.bf16.mxu0 0
      %704 = vmatpush1.bf16.msra.mxu0 0
      %705 = vmatprep.mubr.bf16.mxu0 0
      %706 = vmatmul.mubr.bf16.gmra.mrb[0].mxu0 %v668
      %v707 = vpop.f32.mrb[0].mxu0
      %v708 = vadd.f32 %v639, %v707
      %v709 = vpop.f32.mrb[0].mxu0
      %v710 = vpop.f32.mrb[0].mxu0
      %v711 = vadd.f32 %v644, %v710
      %v712 = vpop.f32.mrb[0].mxu0
      %713 = vmatprep.mubr.bf16.mxu0 0
      %714 = vmatmul.mubr.bf16.gmra.mrb[0].mxu0 %v671
      %v715 = vpop.f32.mrb[0].mxu0
      %v716 = vadd.f32 %v649, %v715
      %v717 = vpop.f32.mrb[0].mxu0
      %v718 = vpop.f32.mrb[0].mxu0
      %v719 = vadd.f32 %v654, %v718
      %v720 = vpop.f32.mrb[0].mxu0
      %721 = vdwg.mxu0
      %v722 = vmax.f32 %v708, 0.0
      %v723 = vmax.f32 %v711, 0.0
      %v724 = vmax.f32 %v716, 0.0
      %v725 = vmax.f32 %v719, 0.0
      %v726 = vpack.c.bf16 %v723, %v722
      %v727 = vpack.c.bf16 %v725, %v724
      %v730 = vunpack.c.l.b16 %v726
      %v731 = vunpack.c.h.b16 %v726
      %v732 = vunpack.c.l.b16 %v727
      %v733 = vunpack.c.h.b16 %v727
      %v734 = vpack.c.b16 %v730, %v730
      %v735 = vpack.c.b16 %v731, %v731
      %v736 = vpack.c.b16 %v732, %v732
      %v737 = vpack.c.b16 %v733, %v733
      %742 = vst [vmem:[%s334] sm:$0xf] %v734
      %743 = vst [vmem:[%s334 + $0x4] sm:$0xf] %v735
      %744 = vst [vmem:[%s334 + $0x8] sm:$0xf] %v736
      %745 = vst [vmem:[%s334 + $0xc] sm:$0xf] %v737
      %p746 = scmp.lt.s32.totalorder %s22, 1
      %s747 = scalar_select %p746, %s22, 1
      %p748 = scmp.lt.s32.totalorder %s23, 0
      %s749 = scalar_select %p748, %s23, 0
      %s750 = smul.addr %s747, 4
      %s751 = sadd.s32 %s749, %s750
      %s752 = smul.addr %s751, 4
      %s753 = scalar_lea.vmem %s7, %s752
      // Predicated region
      $region49: #{tpu_custom_call.1} parent=47 // pred_check
        %p754 = pneg %p211
      $region50: #{tpu_custom_call.1} parent=47 // pred_check_branch
        %756 = sbr.rel (%p754) target = $region52
      $region51: #{tpu_custom_call.1} parent=47 // pred_region
        _
      $region52: #{tpu_custom_call.1} parent=47 // pred_fallthru
        _
    $region48: #{tpu_custom_call.1} parent=5 // pred_fallthru
      _
    %p757 = scmp.le.s32.totalorder 2, %s13
    // Predicated region
    $region53: #{tpu_custom_call.1} parent=5 // pred_check
      %p758 = pneg %p757
    $region54: #{tpu_custom_call.1} parent=5 // pred_check_branch
      %760 = sbr.rel (%p758) target = $region56
    $region55: #{tpu_custom_call.1} parent=5 // pred_region
      %s761 = ssub.s32 %s13, 2
      // Predicated region
      $region57: #{tpu_custom_call.1} parent=55 // pred_check
        %p762 = pneg %p217
      $region58: #{tpu_custom_call.1} parent=55 // pred_check_branch
        %764 = sbr.rel (%p762) target = $region60
      $region59: #{tpu_custom_call.1} parent=55 // pred_region
        %p765 = scmp.lt.s32.totalorder %s24, 1
        %s766 = scalar_select %p765, %s24, 1
        %p767 = scmp.lt.s32.totalorder %s25, 0
        %s768 = scalar_select %p767, %s25, 0
        %s769 = smul.addr %s766, 4
        %s770 = sadd.s32 %s768, %s769
        %s771 = smul.addr %s770, 4
        %s772 = scalar_lea.vmem %s7, %s771
      $region60: #{tpu_custom_call.1} parent=55 // pred_fallthru
        _
    $region56: #{tpu_custom_call.1} parent=5 // pred_fallthru
      _
  $region6: #{tpu_custom_call.1} parent=0 // loop_footer
    %s17 = sadd.s32 1, %s13
  $region7: #{tpu_custom_call.1} parent=0 // loop_footer_branch
    %12 = sbr.rel target = $region3
  $region8: #{tpu_custom_call.1} parent=0 // loop_exit
    _

</llo_original>
